<compile_context>
chip_gen: v7x
topology: tpu7x:2x2x1
jax: 0.10.0
libtpu: 0.0.40
codegen_flags: <defaults>
</compile_context>

<pallas_src>
import jax
import jax.numpy as jnp
from jax.experimental import pallas as pl
from jax.experimental.pallas import tpu as pltpu


TARGET_COVERAGE = 0.9
EFFICIENCY_WEIGHT = 0.1
CALIBRATION_WEIGHT = 0.05

_LANE = 128
_SUB = 8
_TILE_QUANT = _SUB * _LANE          # 1024 samples = one dense (8,128) f32 vreg
_MAX_TILE_SAMPLES = 64 * 1024       # samples per grid step (review: 32K-64K)
_NUM_SPLITS = 2                     # leading "parallel" axis (v7x dual-TC); no-op on 1-TC chips


def _coverage_moments_kernel(w_ref, gt_ref, pred_ref, tau_ref, out_ref,
                             cov_acc, w_acc, e_acc, we_acc, w2_acc, e2_acc):
    i = pl.program_id(1)
    last = pl.num_programs(1) - 1

    @pl.when(i == 0)
    def _init():
        cov_acc[...] = jnp.zeros_like(cov_acc)
        w_acc[...] = jnp.zeros_like(w_acc)
        e_acc[...] = jnp.zeros_like(e_acc)
        we_acc[...] = jnp.zeros_like(we_acc)
        w2_acc[...] = jnp.zeros_like(w2_acc)
        e2_acc[...] = jnp.zeros_like(e2_acc)

    tau = tau_ref[0, 0]                     # scalar from SMEM

    w = w_ref[...]                          # (8, L)  sublane+lane dense
    gt = gt_ref[...]                        # (4, 8, L)
    pred = pred_ref[...]                    # (4, 8, L)

    # Per-coordinate absolute errors; coord axis (size 4) reduced with static
    # leading-dim slices (pairwise max / sum), never an XLU axis reduction.
    err = jnp.abs(gt - pred)                # (4, 8, L)
    e0 = err[0]
    e1 = err[1]
    e2 = err[2]
    e3 = err[3]
    err_max = jnp.maximum(jnp.maximum(e0, e1), jnp.maximum(e2, e3))  # (8, L)
    err_avg = (e0 + e1 + e2 + e3) * 0.25                              # (8, L)

    # covered iff max_coord |gt - pred| <= width * tau.
    # Padded samples (w = 0, gt = pred = 0) always pass this test; the exact
    # constant overcount is subtracted in the wrapper, so no per-step mask.
    covered = (err_max <= w * tau).astype(jnp.float32)

    # Single-pass per-lane moment accumulation (padded samples contribute 0 to
    # every sum except `covered`, which is corrected outside).
    cov_acc[...] += covered
    w_acc[...] += w
    e_acc[...] += err_avg
    we_acc[...] += w * err_avg
    w2_acc[...] += w * w
    e2_acc[...] += err_avg * err_avg

    @pl.when(i == last)
    def _finalize():
        # One full write of this core-slice's resident output block.
        out_ref[...] = jnp.zeros_like(out_ref)
        out_ref[0:1, :] = jnp.full((1, _LANE), jnp.sum(cov_acc[...]), jnp.float32)
        out_ref[1:2, :] = jnp.full((1, _LANE), jnp.sum(w_acc[...]), jnp.float32)
        out_ref[2:3, :] = jnp.full((1, _LANE), jnp.sum(e_acc[...]), jnp.float32)
        out_ref[3:4, :] = jnp.full((1, _LANE), jnp.sum(we_acc[...]), jnp.float32)
        out_ref[4:5, :] = jnp.full((1, _LANE), jnp.sum(w2_acc[...]), jnp.float32)
        out_ref[5:6, :] = jnp.full((1, _LANE), jnp.sum(e2_acc[...]), jnp.float32)


def _round_up(x, m):
    return ((x + m - 1) // m) * m


def regression_coverage_loss(widths, gt_coords, pred_coords, tau,
                             target_coverage=TARGET_COVERAGE,
                             efficiency_weight=EFFICIENCY_WEIGHT,
                             calibration_weight=CALIBRATION_WEIGHT,
                             max_tile_samples=_MAX_TILE_SAMPLES):
    """JAX/Pallas equivalent of RegressionCoverageLoss.forward."""
    widths = jnp.asarray(widths, jnp.float32).reshape(-1)        # (B,)
    gt_coords = jnp.asarray(gt_coords, jnp.float32)              # (B, 4)
    pred_coords = jnp.asarray(pred_coords, jnp.float32)          # (B, 4)
    tau2d = jnp.reshape(jnp.asarray(tau, jnp.float32), (1, 1))

    batch = widths.shape[0]

    # Tile sizing: few, large grid steps; tile count balanced so the last tile
    # is not mostly padding; tile_samples is a multiple of 8*128 so every
    # block is (8,128)-vreg dense.
    tiles_total = max(_NUM_SPLITS, pl.cdiv(batch, max_tile_samples))
    tiles_total = _round_up(tiles_total, _NUM_SPLITS)
    tile_samples = _round_up(pl.cdiv(batch, tiles_total), _TILE_QUANT)
    tile_lanes = tile_samples // _SUB
    steps_per_split = tiles_total // _NUM_SPLITS
    padded = tiles_total * tile_samples
    pad = padded - batch

    # TODO(synk): ideally the producer emits coordinate-major (4, B) / (B,)
    # arrays so this transpose+pad copy (one extra HBM round-trip for a
    # memory-bound kernel) disappears entirely.
    w_2d = jnp.pad(widths, (0, pad)).reshape(tiles_total * _SUB, tile_lanes)
    gt_3d = jnp.pad(gt_coords.T, ((0, 0), (0, pad))).reshape(
        4, tiles_total * _SUB, tile_lanes)
    pred_3d = jnp.pad(pred_coords.T, ((0, 0), (0, pad))).reshape(
        4, tiles_total * _SUB, tile_lanes)

    # Budget: 2 x (9 rows * tile_samples * 4 B) double-buffered inputs
    #         + 6 accumulators * tile_samples * 4 B  ~= 8.5 MiB at max tile.
    vmem_limit = 32 * 1024 * 1024

    raw = pl.pallas_call(
        _coverage_moments_kernel,
        out_shape=jax.ShapeDtypeStruct((_NUM_SPLITS * _SUB, _LANE), jnp.float32),
        grid=(_NUM_SPLITS, steps_per_split),
        in_specs=[
            pl.BlockSpec((_SUB, tile_lanes),
                         lambda c, i: (c * steps_per_split + i, 0)),       # widths
            pl.BlockSpec((4, _SUB, tile_lanes),
                         lambda c, i: (0, c * steps_per_split + i, 0)),    # gt
            pl.BlockSpec((4, _SUB, tile_lanes),
                         lambda c, i: (0, c * steps_per_split + i, 0)),    # pred
            pl.BlockSpec(memory_space=pltpu.MemorySpace.SMEM),             # tau
        ],
        out_specs=pl.BlockSpec((_SUB, _LANE), lambda c, i: (c, 0)),
        scratch_shapes=[pltpu.VMEM((_SUB, tile_lanes), jnp.float32)] * 6,
        compiler_params=pltpu.CompilerParams(
            dimension_semantics=("parallel", "arbitrary"),
            vmem_limit_bytes=vmem_limit),
    )(w_2d, gt_3d, pred_3d, tau2d)

    # Combine per-core-slice partial sums and do the scalar finalize math here
    # (tiny; keeps the dual-TensorCore split trivial on v7x).
    per_split = raw.reshape(_NUM_SPLITS, _SUB, _LANE)[:, :, 0]   # (splits, 8)
    sums = jnp.sum(per_split, axis=0)
    sum_cov, sum_w, sum_e = sums[0], sums[1], sums[2]
    sum_we, sum_w2, sum_e2 = sums[3], sums[4], sums[5]

    inv_n = 1.0 / float(batch)
    # Padded samples always pass the coverage test; subtract the known count.
    actual_coverage = (sum_cov - float(pad)) * inv_n
    coverage_error = actual_coverage - target_coverage
    cov_sq = coverage_error * coverage_error
    coverage_loss = jnp.where(coverage_error < 0.0, cov_sq * 10.0, cov_sq)

    width_mean = sum_w * inv_n
    error_mean = sum_e * inv_n
    efficiency_loss = width_mean

    # TODO(synk): single-pass moments (E[x^2]-E[x]^2) can lose precision vs the
    # two-pass centered formula when means dominate the spread; move to
    # per-tile centered partials / Kahan accumulation if correlation accuracy
    # matters at very large batch.
    covariance = sum_we * inv_n - width_mean * error_mean
    width_var = jnp.maximum(sum_w2 * inv_n - width_mean * width_mean, 0.0)
    error_var = jnp.maximum(sum_e2 * inv_n - error_mean * error_mean, 0.0)
    width_std = jnp.sqrt(width_var) + 1e-6
    error_std = jnp.sqrt(error_var) + 1e-6
    correlation = covariance / (error_std * width_std)
    calibration_loss = 1.0 - correlation

    total = jnp.where(
        actual_coverage < target_coverage - 0.3,
        coverage_loss + 0.0001 * efficiency_weight * efficiency_loss,
        jnp.where(
            actual_coverage < target_coverage - 0.1,
            coverage_loss + 0.01 * efficiency_weight * efficiency_loss,
            coverage_loss + efficiency_weight * efficiency_loss
            + calibration_weight * calibration_loss))

    return {
        'total': total,
        'coverage': coverage_loss,
        'efficiency': efficiency_loss,
        'calibration': calibration_loss,
        'actual_coverage': actual_coverage,
        'avg_width': width_mean,
        'correlation': correlation,
    }


def _reference(widths, gt_coords, pred_coords, tau,
               target_coverage=TARGET_COVERAGE,
               efficiency_weight=EFFICIENCY_WEIGHT,
               calibration_weight=CALIBRATION_WEIGHT):
    """Pure-JAX reference mirroring the PyTorch module."""
    widths = jnp.asarray(widths, jnp.float32).reshape(-1, 1)
    errors = jnp.abs(gt_coords - pred_coords)
    half = widths * tau
    lower = pred_coords - half
    upper = pred_coords + half
    covered = jnp.logical_and(gt_coords >= lower, gt_coords <= upper)
    sample_covered = jnp.all(covered, axis=1).astype(jnp.float32)
    actual_coverage = jnp.mean(sample_covered)
    coverage_error = actual_coverage - target_coverage
    cov_sq = coverage_error ** 2
    coverage_loss = jnp.where(coverage_error < 0, cov_sq * 10.0, cov_sq)
    efficiency_loss = jnp.mean(widths)
    avg_err = jnp.mean(errors, axis=1, keepdims=True)
    err_c = avg_err - jnp.mean(avg_err)
    wid_c = widths - jnp.mean(widths)
    covariance = jnp.mean(err_c * wid_c)
    error_std = jnp.sqrt(jnp.mean(err_c ** 2)) + 1e-6
    width_std = jnp.sqrt(jnp.mean(wid_c ** 2)) + 1e-6
    correlation = covariance / (error_std * width_std)
    calibration_loss = 1.0 - correlation
    total = jnp.where(
        actual_coverage < target_coverage - 0.3,
        coverage_loss + 0.0001 * efficiency_weight * efficiency_loss,
        jnp.where(
            actual_coverage < target_coverage - 0.1,
            coverage_loss + 0.01 * efficiency_weight * efficiency_loss,
            coverage_loss + efficiency_weight * efficiency_loss
            + calibration_weight * calibration_loss))
    return {
        'total': total, 'coverage': coverage_loss, 'efficiency': efficiency_loss,
        'calibration': calibration_loss, 'actual_coverage': actual_coverage,
        'avg_width': jnp.mean(widths), 'correlation': correlation,
    }


def _check(losses, ref):
    for name in losses:
        got = float(losses[name])
        want = float(ref[name])
        # single-pass moments vs two-pass reference: allow small fp slack
        assert abs(got - want) <= 1e-4 + 1e-3 * abs(want), (name, got, want)


if __name__ == "__main__":
    key = jax.random.PRNGKey(0)
    k1, k2, k3, k4, k5, k6 = jax.random.split(key, 6)

    # Small case (matches module's natural shapes): batch=8 boxes of 4 coords.
    B = 8
    pred_coords = jax.random.uniform(k1, (B, 4), jnp.float32, minval=0.0, maxval=100.0)
    gt_coords = pred_coords + jax.random.normal(k2, (B, 4), jnp.float32) * 2.0
    widths = jnp.abs(jax.random.normal(k3, (B, 1), jnp.float32)) * 3.0 + 0.5
    tau = jnp.float32(1.5)

    losses = regression_coverage_loss(widths, gt_coords, pred_coords, tau)
    jax.block_until_ready(losses['total'])
    _check(losses, _reference(widths, gt_coords, pred_coords, tau))

    # Second case: force multiple grid steps per core slice + ragged padding.
    B2 = 3000
    pred2 = jax.random.uniform(k4, (B2, 4), jnp.float32, minval=0.0, maxval=100.0)
    gt2 = pred2 + jax.random.normal(k5, (B2, 4), jnp.float32) * 2.0
    w2 = jnp.abs(jax.random.normal(k6, (B2, 1), jnp.float32)) * 3.0 + 0.5

    losses2 = regression_coverage_loss(w2, gt2, pred2, tau, max_tile_samples=1024)
    jax.block_until_ready(losses2['total'])
    _check(losses2, _reference(w2, gt2, pred2, tau))

    print("KERNEL_OK")
</pallas_src>

<mosaic_0001>
module attributes {stable_mosaic.version = 11 : i64} {
  func.func @_coverage_moments_kernel(%arg0: i32, %arg1: i32, %arg2: memref<8x128xf32, #tpu.memory_space<vmem>>, %arg3: memref<4x8x128xf32, #tpu.memory_space<vmem>>, %arg4: memref<4x8x128xf32, #tpu.memory_space<vmem>>, %arg5: memref<1x1xf32, #tpu.memory_space<smem>>, %arg6: memref<8x128xf32, #tpu.memory_space<vmem>>, %arg7: memref<8x128xf32, #tpu.memory_space<vmem>>, %arg8: memref<8x128xf32, #tpu.memory_space<vmem>>, %arg9: memref<8x128xf32, #tpu.memory_space<vmem>>, %arg10: memref<8x128xf32, #tpu.memory_space<vmem>>, %arg11: memref<8x128xf32, #tpu.memory_space<vmem>>, %arg12: memref<8x128xf32, #tpu.memory_space<vmem>>) attributes {dimension_semantics = [#tpu.dimension_semantics<parallel>, #tpu.dimension_semantics<arbitrary>], iteration_bounds = array<i64: 2, 1>, scalar_prefetch = 0 : i64, scratch_operands = 6 : i64, tpu.core_type = #tpu.core_type<tc>, window_params = [{transform_indices = @transform_0, window_bounds = array<i64: 8, 128>}, {transform_indices = @transform_1, window_bounds = array<i64: 4, 8, 128>}, {transform_indices = @transform_2, window_bounds = array<i64: 4, 8, 128>}, {transform_indices = @transform_3, window_bounds = array<i64: 1, 1>}, {transform_indices = @transform_4, window_bounds = array<i64: 8, 128>}]} {
    %c0_i32 = arith.constant 0 : i32
    %0 = arith.cmpi eq, %arg1, %c0_i32 : i32
    %1 = arith.extui %0 : i1 to i32
    %c0_i32_0 = arith.constant 0 : i32
    %2 = arith.cmpi ne, %1, %c0_i32_0 : i32
    scf.if %2 {
      %cst_36 = arith.constant 0.000000e+00 : f32
      %54 = vector.broadcast %cst_36 : f32 to vector<8x128xf32>
      %c0_37 = arith.constant 0 : index
      %c0_38 = arith.constant 0 : index
      %55 = vector.load %arg7[%c0_37, %c0_38] : memref<8x128xf32, #tpu.memory_space<vmem>>, vector<8x128xf32>
      tpu.vector_store %arg7[%c0_37, %c0_38], %54 {strides = array<i32>} : memref<8x128xf32, #tpu.memory_space<vmem>>, vector<8x128xf32>,
      %cst_39 = arith.constant 0.000000e+00 : f32
      %56 = vector.broadcast %cst_39 : f32 to vector<8x128xf32>
      %c0_40 = arith.constant 0 : index
      %c0_41 = arith.constant 0 : index
      %57 = vector.load %arg8[%c0_40, %c0_41] : memref<8x128xf32, #tpu.memory_space<vmem>>, vector<8x128xf32>
      tpu.vector_store %arg8[%c0_40, %c0_41], %56 {strides = array<i32>} : memref<8x128xf32, #tpu.memory_space<vmem>>, vector<8x128xf32>,
      %cst_42 = arith.constant 0.000000e+00 : f32
      %58 = vector.broadcast %cst_42 : f32 to vector<8x128xf32>
      %c0_43 = arith.constant 0 : index
      %c0_44 = arith.constant 0 : index
      %59 = vector.load %arg9[%c0_43, %c0_44] : memref<8x128xf32, #tpu.memory_space<vmem>>, vector<8x128xf32>
      tpu.vector_store %arg9[%c0_43, %c0_44], %58 {strides = array<i32>} : memref<8x128xf32, #tpu.memory_space<vmem>>, vector<8x128xf32>,
      %cst_45 = arith.constant 0.000000e+00 : f32
      %60 = vector.broadcast %cst_45 : f32 to vector<8x128xf32>
      %c0_46 = arith.constant 0 : index
      %c0_47 = arith.constant 0 : index
      %61 = vector.load %arg10[%c0_46, %c0_47] : memref<8x128xf32, #tpu.memory_space<vmem>>, vector<8x128xf32>
      tpu.vector_store %arg10[%c0_46, %c0_47], %60 {strides = array<i32>} : memref<8x128xf32, #tpu.memory_space<vmem>>, vector<8x128xf32>,
      %cst_48 = arith.constant 0.000000e+00 : f32
      %62 = vector.broadcast %cst_48 : f32 to vector<8x128xf32>
      %c0_49 = arith.constant 0 : index
      %c0_50 = arith.constant 0 : index
      %63 = vector.load %arg11[%c0_49, %c0_50] : memref<8x128xf32, #tpu.memory_space<vmem>>, vector<8x128xf32>
      tpu.vector_store %arg11[%c0_49, %c0_50], %62 {strides = array<i32>} : memref<8x128xf32, #tpu.memory_space<vmem>>, vector<8x128xf32>,
      %cst_51 = arith.constant 0.000000e+00 : f32
      %64 = vector.broadcast %cst_51 : f32 to vector<8x128xf32>
      %c0_52 = arith.constant 0 : index
      %c0_53 = arith.constant 0 : index
      %65 = vector.load %arg12[%c0_52, %c0_53] : memref<8x128xf32, #tpu.memory_space<vmem>>, vector<8x128xf32>
      tpu.vector_store %arg12[%c0_52, %c0_53], %64 {strides = array<i32>} : memref<8x128xf32, #tpu.memory_space<vmem>>, vector<8x128xf32>,
    } else {
    }
    %c0 = arith.constant 0 : index
    %c0_1 = arith.constant 0 : index
    %3 = memref.load %arg5[%c0, %c0_1] : memref<1x1xf32, #tpu.memory_space<smem>>
    %c0_2 = arith.constant 0 : index
    %c0_3 = arith.constant 0 : index
    %4 = vector.load %arg2[%c0_2, %c0_3] : memref<8x128xf32, #tpu.memory_space<vmem>>, vector<8x128xf32>
    %c0_4 = arith.constant 0 : index
    %c0_5 = arith.constant 0 : index
    %c0_6 = arith.constant 0 : index
    %5 = vector.load %arg3[%c0_4, %c0_5, %c0_6] : memref<4x8x128xf32, #tpu.memory_space<vmem>>, vector<4x8x128xf32>
    %c0_7 = arith.constant 0 : index
    %c0_8 = arith.constant 0 : index
    %c0_9 = arith.constant 0 : index
    %6 = vector.load %arg4[%c0_7, %c0_8, %c0_9] : memref<4x8x128xf32, #tpu.memory_space<vmem>>, vector<4x8x128xf32>
    %7 = arith.subf %5, %6 : vector<4x8x128xf32>
    %8 = math.absf %7 : vector<4x8x128xf32>
    %9 = vector.extract_strided_slice %8 {offsets = [0, 0, 0], sizes = [1, 8, 128], strides = [1, 1, 1]} : vector<4x8x128xf32> to vector<1x8x128xf32>
    %10 = vector.shape_cast %9 : vector<1x8x128xf32> to vector<8x128xf32>
    %11 = vector.extract_strided_slice %8 {offsets = [1, 0, 0], sizes = [1, 8, 128], strides = [1, 1, 1]} : vector<4x8x128xf32> to vector<1x8x128xf32>
    %12 = vector.shape_cast %11 : vector<1x8x128xf32> to vector<8x128xf32>
    %13 = vector.extract_strided_slice %8 {offsets = [2, 0, 0], sizes = [1, 8, 128], strides = [1, 1, 1]} : vector<4x8x128xf32> to vector<1x8x128xf32>
    %14 = vector.shape_cast %13 : vector<1x8x128xf32> to vector<8x128xf32>
    %15 = vector.extract_strided_slice %8 {offsets = [3, 0, 0], sizes = [1, 8, 128], strides = [1, 1, 1]} : vector<4x8x128xf32> to vector<1x8x128xf32>
    %16 = vector.shape_cast %15 : vector<1x8x128xf32> to vector<8x128xf32>
    %17 = arith.maximumf %10, %12 : vector<8x128xf32>
    %18 = arith.maximumf %14, %16 : vector<8x128xf32>
    %19 = arith.maximumf %17, %18 : vector<8x128xf32>
    %20 = arith.addf %10, %12 : vector<8x128xf32>
    %21 = arith.addf %20, %14 : vector<8x128xf32>
    %22 = arith.addf %21, %16 : vector<8x128xf32>
    %cst = arith.constant 2.500000e-01 : f32
    %23 = vector.broadcast %cst : f32 to vector<8x128xf32>
    %24 = arith.mulf %22, %23 : vector<8x128xf32>
    %25 = vector.broadcast %3 : f32 to vector<8x128xf32>
    %26 = arith.mulf %4, %25 : vector<8x128xf32>
    %27 = arith.cmpf ole, %19, %26 : vector<8x128xf32>
    %28 = arith.extui %27 : vector<8x128xi1> to vector<8x128xi32>
    %29 = arith.sitofp %28 : vector<8x128xi32> to vector<8x128xf32>
    %c0_10 = arith.constant 0 : index
    %c0_11 = arith.constant 0 : index
    %30 = vector.load %arg7[%c0_10, %c0_11] : memref<8x128xf32, #tpu.memory_space<vmem>>, vector<8x128xf32>
    %31 = arith.addf %30, %29 : vector<8x128xf32>
    %c0_12 = arith.constant 0 : index
    %c0_13 = arith.constant 0 : index
    %32 = vector.load %arg7[%c0_12, %c0_13] : memref<8x128xf32, #tpu.memory_space<vmem>>, vector<8x128xf32>
    tpu.vector_store %arg7[%c0_12, %c0_13], %31 {strides = array<i32>} : memref<8x128xf32, #tpu.memory_space<vmem>>, vector<8x128xf32>,
    %c0_14 = arith.constant 0 : index
    %c0_15 = arith.constant 0 : index
    %33 = vector.load %arg8[%c0_14, %c0_15] : memref<8x128xf32, #tpu.memory_space<vmem>>, vector<8x128xf32>
    %34 = arith.addf %33, %4 : vector<8x128xf32>
    %c0_16 = arith.constant 0 : index
    %c0_17 = arith.constant 0 : index
    %35 = vector.load %arg8[%c0_16, %c0_17] : memref<8x128xf32, #tpu.memory_space<vmem>>, vector<8x128xf32>
    tpu.vector_store %arg8[%c0_16, %c0_17], %34 {strides = array<i32>} : memref<8x128xf32, #tpu.memory_space<vmem>>, vector<8x128xf32>,
    %c0_18 = arith.constant 0 : index
    %c0_19 = arith.constant 0 : index
    %36 = vector.load %arg9[%c0_18, %c0_19] : memref<8x128xf32, #tpu.memory_space<vmem>>, vector<8x128xf32>
    %37 = arith.addf %36, %24 : vector<8x128xf32>
    %c0_20 = arith.constant 0 : index
    %c0_21 = arith.constant 0 : index
    %38 = vector.load %arg9[%c0_20, %c0_21] : memref<8x128xf32, #tpu.memory_space<vmem>>, vector<8x128xf32>
    tpu.vector_store %arg9[%c0_20, %c0_21], %37 {strides = array<i32>} : memref<8x128xf32, #tpu.memory_space<vmem>>, vector<8x128xf32>,
    %c0_22 = arith.constant 0 : index
    %c0_23 = arith.constant 0 : index
    %39 = vector.load %arg10[%c0_22, %c0_23] : memref<8x128xf32, #tpu.memory_space<vmem>>, vector<8x128xf32>
    %40 = arith.mulf %4, %24 : vector<8x128xf32>
    %41 = arith.addf %39, %40 : vector<8x128xf32>
    %c0_24 = arith.constant 0 : index
    %c0_25 = arith.constant 0 : index
    %42 = vector.load %arg10[%c0_24, %c0_25] : memref<8x128xf32, #tpu.memory_space<vmem>>, vector<8x128xf32>
    tpu.vector_store %arg10[%c0_24, %c0_25], %41 {strides = array<i32>} : memref<8x128xf32, #tpu.memory_space<vmem>>, vector<8x128xf32>,
    %c0_26 = arith.constant 0 : index
    %c0_27 = arith.constant 0 : index
    %43 = vector.load %arg11[%c0_26, %c0_27] : memref<8x128xf32, #tpu.memory_space<vmem>>, vector<8x128xf32>
    %44 = arith.mulf %4, %4 : vector<8x128xf32>
    %45 = arith.addf %43, %44 : vector<8x128xf32>
    %c0_28 = arith.constant 0 : index
    %c0_29 = arith.constant 0 : index
    %46 = vector.load %arg11[%c0_28, %c0_29] : memref<8x128xf32, #tpu.memory_space<vmem>>, vector<8x128xf32>
    tpu.vector_store %arg11[%c0_28, %c0_29], %45 {strides = array<i32>} : memref<8x128xf32, #tpu.memory_space<vmem>>, vector<8x128xf32>,
    %c0_30 = arith.constant 0 : index
    %c0_31 = arith.constant 0 : index
    %47 = vector.load %arg12[%c0_30, %c0_31] : memref<8x128xf32, #tpu.memory_space<vmem>>, vector<8x128xf32>
    %48 = arith.mulf %24, %24 : vector<8x128xf32>
    %49 = arith.addf %47, %48 : vector<8x128xf32>
    %c0_32 = arith.constant 0 : index
    %c0_33 = arith.constant 0 : index
    %50 = vector.load %arg12[%c0_32, %c0_33] : memref<8x128xf32, #tpu.memory_space<vmem>>, vector<8x128xf32>
    tpu.vector_store %arg12[%c0_32, %c0_33], %49 {strides = array<i32>} : memref<8x128xf32, #tpu.memory_space<vmem>>, vector<8x128xf32>,
    %c0_i32_34 = arith.constant 0 : i32
    %51 = arith.cmpi eq, %arg1, %c0_i32_34 : i32
    %52 = arith.extui %51 : i1 to i32
    %c0_i32_35 = arith.constant 0 : i32
    %53 = arith.cmpi ne, %52, %c0_i32_35 : i32
    scf.if %53 {
      %cst_36 = arith.constant 0.000000e+00 : f32
      %54 = vector.broadcast %cst_36 : f32 to vector<8x128xf32>
      %c0_37 = arith.constant 0 : index
      %c0_38 = arith.constant 0 : index
      %55 = vector.load %arg6[%c0_37, %c0_38] : memref<8x128xf32, #tpu.memory_space<vmem>>, vector<8x128xf32>
      tpu.vector_store %arg6[%c0_37, %c0_38], %54 {strides = array<i32>} : memref<8x128xf32, #tpu.memory_space<vmem>>, vector<8x128xf32>,
      %c0_39 = arith.constant 0 : index
      %c0_40 = arith.constant 0 : index
      %56 = vector.load %arg7[%c0_39, %c0_40] : memref<8x128xf32, #tpu.memory_space<vmem>>, vector<8x128xf32>
      %57 = vector.shape_cast %56 : vector<8x128xf32> to vector<1x8x128xf32>
      %cst_41 = arith.constant dense<0.000000e+00> : vector<1xf32>
      %58 = vector.multi_reduction <add>, %57, %cst_41 [1, 2] : vector<1x8x128xf32> to vector<1xf32>
      %59 = vector.shape_cast %58 : vector<1xf32> to vector<1x1x1xf32>
      %60 = vector.extract %59[0, 0, 0] : f32 from vector<1x1x1xf32>
      %61 = vector.broadcast %60 : f32 to vector<1x128xf32>
      %c0_42 = arith.constant 0 : index
      %c0_43 = arith.constant 0 : index
      %62 = vector.load %arg6[%c0_42, %c0_43] : memref<8x128xf32, #tpu.memory_space<vmem>>, vector<1x128xf32>
      tpu.vector_store %arg6[%c0_42, %c0_43], %61 {strides = array<i32>} : memref<8x128xf32, #tpu.memory_space<vmem>>, vector<1x128xf32>,
      %c0_44 = arith.constant 0 : index
      %c0_45 = arith.constant 0 : index
      %63 = vector.load %arg8[%c0_44, %c0_45] : memref<8x128xf32, #tpu.memory_space<vmem>>, vector<8x128xf32>
      %64 = vector.shape_cast %63 : vector<8x128xf32> to vector<1x8x128xf32>
      %cst_46 = arith.constant dense<0.000000e+00> : vector<1xf32>
      %65 = vector.multi_reduction <add>, %64, %cst_46 [1, 2] : vector<1x8x128xf32> to vector<1xf32>
      %66 = vector.shape_cast %65 : vector<1xf32> to vector<1x1x1xf32>
      %67 = vector.extract %66[0, 0, 0] : f32 from vector<1x1x1xf32>
      %68 = vector.broadcast %67 : f32 to vector<1x128xf32>
      %c1 = arith.constant 1 : index
      %c0_47 = arith.constant 0 : index
      %69 = vector.load %arg6[%c1, %c0_47] : memref<8x128xf32, #tpu.memory_space<vmem>>, vector<1x128xf32>
      tpu.vector_store %arg6[%c1, %c0_47], %68 {strides = array<i32>} : memref<8x128xf32, #tpu.memory_space<vmem>>, vector<1x128xf32>,
      %c0_48 = arith.constant 0 : index
      %c0_49 = arith.constant 0 : index
      %70 = vector.load %arg9[%c0_48, %c0_49] : memref<8x128xf32, #tpu.memory_space<vmem>>, vector<8x128xf32>
      %71 = vector.shape_cast %70 : vector<8x128xf32> to vector<1x8x128xf32>
      %cst_50 = arith.constant dense<0.000000e+00> : vector<1xf32>
      %72 = vector.multi_reduction <add>, %71, %cst_50 [1, 2] : vector<1x8x128xf32> to vector<1xf32>
      %73 = vector.shape_cast %72 : vector<1xf32> to vector<1x1x1xf32>
      %74 = vector.extract %73[0, 0, 0] : f32 from vector<1x1x1xf32>
      %75 = vector.broadcast %74 : f32 to vector<1x128xf32>
      %c2 = arith.constant 2 : index
      %c0_51 = arith.constant 0 : index
      %76 = vector.load %arg6[%c2, %c0_51] : memref<8x128xf32, #tpu.memory_space<vmem>>, vector<1x128xf32>
      tpu.vector_store %arg6[%c2, %c0_51], %75 {strides = array<i32>} : memref<8x128xf32, #tpu.memory_space<vmem>>, vector<1x128xf32>,
      %c0_52 = arith.constant 0 : index
      %c0_53 = arith.constant 0 : index
      %77 = vector.load %arg10[%c0_52, %c0_53] : memref<8x128xf32, #tpu.memory_space<vmem>>, vector<8x128xf32>
      %78 = vector.shape_cast %77 : vector<8x128xf32> to vector<1x8x128xf32>
      %cst_54 = arith.constant dense<0.000000e+00> : vector<1xf32>
      %79 = vector.multi_reduction <add>, %78, %cst_54 [1, 2] : vector<1x8x128xf32> to vector<1xf32>
      %80 = vector.shape_cast %79 : vector<1xf32> to vector<1x1x1xf32>
      %81 = vector.extract %80[0, 0, 0] : f32 from vector<1x1x1xf32>
      %82 = vector.broadcast %81 : f32 to vector<1x128xf32>
      %c3 = arith.constant 3 : index
      %c0_55 = arith.constant 0 : index
      %83 = vector.load %arg6[%c3, %c0_55] : memref<8x128xf32, #tpu.memory_space<vmem>>, vector<1x128xf32>
      tpu.vector_store %arg6[%c3, %c0_55], %82 {strides = array<i32>} : memref<8x128xf32, #tpu.memory_space<vmem>>, vector<1x128xf32>,
      %c0_56 = arith.constant 0 : index
      %c0_57 = arith.constant 0 : index
      %84 = vector.load %arg11[%c0_56, %c0_57] : memref<8x128xf32, #tpu.memory_space<vmem>>, vector<8x128xf32>
      %85 = vector.shape_cast %84 : vector<8x128xf32> to vector<1x8x128xf32>
      %cst_58 = arith.constant dense<0.000000e+00> : vector<1xf32>
      %86 = vector.multi_reduction <add>, %85, %cst_58 [1, 2] : vector<1x8x128xf32> to vector<1xf32>
      %87 = vector.shape_cast %86 : vector<1xf32> to vector<1x1x1xf32>
      %88 = vector.extract %87[0, 0, 0] : f32 from vector<1x1x1xf32>
      %89 = vector.broadcast %88 : f32 to vector<1x128xf32>
      %c4 = arith.constant 4 : index
      %c0_59 = arith.constant 0 : index
      %90 = vector.load %arg6[%c4, %c0_59] : memref<8x128xf32, #tpu.memory_space<vmem>>, vector<1x128xf32>
      tpu.vector_store %arg6[%c4, %c0_59], %89 {strides = array<i32>} : memref<8x128xf32, #tpu.memory_space<vmem>>, vector<1x128xf32>,
      %c0_60 = arith.constant 0 : index
      %c0_61 = arith.constant 0 : index
      %91 = vector.load %arg12[%c0_60, %c0_61] : memref<8x128xf32, #tpu.memory_space<vmem>>, vector<8x128xf32>
      %92 = vector.shape_cast %91 : vector<8x128xf32> to vector<1x8x128xf32>
      %cst_62 = arith.constant dense<0.000000e+00> : vector<1xf32>
      %93 = vector.multi_reduction <add>, %92, %cst_62 [1, 2] : vector<1x8x128xf32> to vector<1xf32>
      %94 = vector.shape_cast %93 : vector<1xf32> to vector<1x1x1xf32>
      %95 = vector.extract %94[0, 0, 0] : f32 from vector<1x1x1xf32>
      %96 = vector.broadcast %95 : f32 to vector<1x128xf32>
      %c5 = arith.constant 5 : index
      %c0_63 = arith.constant 0 : index
      %97 = vector.load %arg6[%c5, %c0_63] : memref<8x128xf32, #tpu.memory_space<vmem>>, vector<1x128xf32>
      tpu.vector_store %arg6[%c5, %c0_63], %96 {strides = array<i32>} : memref<8x128xf32, #tpu.memory_space<vmem>>, vector<1x128xf32>,
    } else {
    }
    return
  }
  func.func @transform_0(%arg0: i32, %arg1: i32) -> (i32, i32) {
    %c1_i32 = arith.constant 1 : i32
    %0 = arith.muli %arg0, %c1_i32 : i32
    %1 = arith.addi %0, %arg1 : i32
    %c0_i32 = arith.constant 0 : i32
    %c0_i32_0 = arith.constant 0 : i32
    return %1, %c0_i32 : i32, i32
  }
  func.func @transform_1(%arg0: i32, %arg1: i32) -> (i32, i32, i32) {
    %c1_i32 = arith.constant 1 : i32
    %0 = arith.muli %arg0, %c1_i32 : i32
    %1 = arith.addi %0, %arg1 : i32
    %c0_i32 = arith.constant 0 : i32
    %c0_i32_0 = arith.constant 0 : i32
    %c0_i32_1 = arith.constant 0 : i32
    return %c0_i32, %1, %c0_i32_0 : i32, i32, i32
  }
  func.func @transform_2(%arg0: i32, %arg1: i32) -> (i32, i32, i32) {
    %c1_i32 = arith.constant 1 : i32
    %0 = arith.muli %arg0, %c1_i32 : i32
    %1 = arith.addi %0, %arg1 : i32
    %c0_i32 = arith.constant 0 : i32
    %c0_i32_0 = arith.constant 0 : i32
    %c0_i32_1 = arith.constant 0 : i32
    return %c0_i32, %1, %c0_i32_0 : i32, i32, i32
  }
  func.func @transform_3(%arg0: i32, %arg1: i32) -> (i32, i32) {
    %c0_i32 = arith.constant 0 : i32
    %c0_i32_0 = arith.constant 0 : i32
    %c0_i32_1 = arith.constant 0 : i32
    return %c0_i32, %c0_i32_0 : i32, i32
  }
  func.func @transform_4(%arg0: i32, %arg1: i32) -> (i32, i32) {
    %c0_i32 = arith.constant 0 : i32
    %c0_i32_0 = arith.constant 0 : i32
    return %arg0, %c0_i32 : i32, i32
  }
}

</mosaic_0001>

<llo_original>
// kernel: tpu_custom_call.1
$region0: #{tpu_custom_call.1}
  #allocation0 [shape = 'u32[]', space=smem, size = 0x4, offset = 0x4, fixed_abs, tag = 'smem constant byte address 0x4 - core index']
  #allocation1 [shape = 'u32[144,128]{1,0:T(1,128)}', space=vmem, size = 0x12000, scoped, tag = 'internal scratch']
  #allocation2 [shape = 'f32[8,128]{1,0:T(8,128)}', space=vmem, size = 0x1000, scoped, tag = 'scratch operand']
  #allocation3 [shape = 'f32[8,128]{1,0:T(8,128)}', space=vmem, size = 0x1000, scoped, tag = 'scratch operand']
  #allocation4 [shape = 'f32[8,128]{1,0:T(8,128)}', space=vmem, size = 0x1000, scoped, tag = 'scratch operand']
  #allocation5 [shape = 'f32[8,128]{1,0:T(8,128)}', space=vmem, size = 0x1000, scoped, tag = 'scratch operand']
  #allocation6 [shape = 'f32[8,128]{1,0:T(8,128)}', space=vmem, size = 0x1000, scoped, tag = 'scratch operand']
  #allocation7 [shape = 'f32[8,128]{1,0:T(8,128)}', space=vmem, size = 0x1000, scoped, tag = 'scratch operand']
  #allocation8 [shape = 'f32[1,1]{1,0:T(1,128)S(6)}', space=smem, size = 0x200, scoped, tag = 'scoped memory for tpu_custom_call.1']
  %s0 = inlined_call_operand.hbm [shape: f32[16,128], index: 0, kind: input, shape index: {}]
  %s1 = inlined_call_operand.hbm [shape: f32[4,16,128], index: 1, kind: input, shape index: {}]
  %s2 = inlined_call_operand.hbm [shape: f32[4,16,128], index: 2, kind: input, shape index: {}]
  %s3 = inlined_call_operand.<no memory space> [shape: f32[1,1], index: 3, kind: input, shape index: {}]
  %s4 = inlined_call_operand.hbm [shape: f32[16,128], index: 4, kind: output, shape index: {}]
  %s5 = sld [smem:[#allocation0]]
  $region69: #{tpu_custom_call.1} parent=0
    _
  %s7 = ssub.s32 1, %s5
  %s8 = scalar_select 0, %s7, %s5
  %9 = sst [smem:[#allocation8]] %s3
  $region1: #{tpu_custom_call.1} parent=0
    #allocation9 [shape = 'u8[8192]{0}', space=vmem, size = 0x2000, scoped, tag = 'input window, operand 0']
    #allocation10 [shape = 's32[2]{0}', space=sflag, size = 0x8, scoped, tag = 'scoped memory for tpu_custom_call.1']
    #allocation11 [shape = 's32[2]{0}', space=sflag, size = 0x8, scoped, tag = 'scoped memory for tpu_custom_call.1']
    #allocation12 [shape = 'u8[32768]{0}', space=vmem, size = 0x8000, scoped, tag = 'input window, operand 1']
    #allocation13 [shape = 's32[2]{0}', space=sflag, size = 0x8, scoped, tag = 'scoped memory for tpu_custom_call.1']
    #allocation14 [shape = 'u8[32768]{0}', space=vmem, size = 0x8000, scoped, tag = 'input window, operand 2']
    #allocation15 [shape = 'u8[8192]{0}', space=vmem, size = 0x2000, scoped, tag = 'output window, operand 0']
    %10 = vsyncpa [#allocation10], 0
    %s11 = scalar_lea.sflag [#allocation10], 1
    %12 = vsyncpa %s11, 0
    %13 = vsyncpa [#allocation13], 0
    %s14 = scalar_lea.sflag [#allocation13], 1
    %15 = vsyncpa %s14, 0
    %16 = vsyncpa [#allocation11], 0
    %s17 = scalar_lea.sflag [#allocation11], 1
    %18 = vsyncpa %s17, 0
    loop: start=0, step=1, limit=4
    $region2: #{tpu_custom_call.1} parent=1 // loop_pre_header
      _
    $region3: #{tpu_custom_call.1} parent=1 // loop_header
      %s20 = sphi 0, %s24
      %p21 = scmp.ge.s32.totalorder %s20, 4
      %s27 = sphi 0, %s39
      %s28 = sphi 0, %s35
      %s29 = sphi 0, %s27
      %s30 = sphi 0, %s28
      %s31 = sphi 0, %s29
      %s32 = sphi 0, %s30
      %s44 = sphi 0, %s46
      %s47 = sphi 0, %s44
      %s48 = sphi 0, %s47
      %s64 = sphi 0, %s48
      %s72 = sphi 0, %s74
      %s75 = sphi 0, %s72
      %s76 = sphi 0, %s75
      %s92 = sphi 0, %s76
      %s100 = sphi 0, %s102
      %s103 = sphi 0, %s100
      %s104 = sphi 0, %s103
      %s120 = sphi 0, %s104
      %s124 = sphi 0, %s124
      %s126 = sphi 0, %s124
      %s127 = sphi 0, %s126
      %s141 = sphi 0, %s127
      %s147 = sphi 0, %s149
      %s150 = sphi 0, %s147
      %s151 = sphi 0, %s150
      %s167 = sphi 0, %s151
    $region4: #{tpu_custom_call.1} parent=1 // loop_header_branch
      %23 = sbr.rel (%p21) target = $region8
    $region5: #{tpu_custom_call.1} parent=1 // loop_body
      %s25 = ssub.s32 %s20, 1
      %s26 = ssub.s32 %s20, 2
      %s33 = sadd.s32 1, %s28
      %p34 = scmp.ge.s32.totalorder %s33, 1
      %s35 = scalar_select %p34, 0, %s33
      %s36 = sadd.s32 1, %s27
      %s37 = scalar_select %p34, %s36, %s27
      %p38 = scmp.ge.s32.totalorder %s37, 2
      %s39 = scalar_select %p38, 0, %s37
      %s40 = sadd.s32 %s27, %s28
      %s41 = sadd.s32 %s39, %s35
      %s42 = ssub.s32 %s40, %s41
      %p43 = scmp.eq.s32.totalorder %s42, 0
      %s45 = sadd.s32 %s44, 1
      %s46 = scalar_select %p43, %s44, %s45
      %p49 = pneg %p43
      %p50 = scmp.eq.s32.totalorder %s20, 1
      %p51 = por %p49, %p50
      %p52 = scmp.ne.s32.totalorder %s44, %s47
      %p53 = scmp.eq.s32.totalorder %s20, 0
      %p54 = por %p52, %p53
      %p55 = scmp.ne.s32.totalorder %s44, %s47
      %p56 = scmp.eq.s32.totalorder %s25, 1
      %p57 = por %p55, %p56
      %p58 = scmp.ne.s32.totalorder %s47, %s48
      %p59 = scmp.eq.s32.totalorder %s25, 0
      %p60 = por %p58, %p59
      %p61 = scmp.ne.s32.totalorder %s47, %s48
      %p62 = scmp.eq.s32.totalorder %s26, 1
      %p63 = por %p61, %p62
      %p65 = scmp.ne.s32.totalorder %s48, %s64
      %p66 = scmp.eq.s32.totalorder %s26, 0
      %p67 = por %p65, %p66
      %s68 = sadd.s32 %s27, %s28
      %s69 = sadd.s32 %s39, %s35
      %s70 = ssub.s32 %s68, %s69
      %p71 = scmp.eq.s32.totalorder %s70, 0
      %s73 = sadd.s32 %s72, 1
      %s74 = scalar_select %p71, %s72, %s73
      %p77 = pneg %p71
      %p78 = scmp.eq.s32.totalorder %s20, 1
      %p79 = por %p77, %p78
      %p80 = scmp.ne.s32.totalorder %s72, %s75
      %p81 = scmp.eq.s32.totalorder %s20, 0
      %p82 = por %p80, %p81
      %p83 = scmp.ne.s32.totalorder %s72, %s75
      %p84 = scmp.eq.s32.totalorder %s25, 1
      %p85 = por %p83, %p84
      %p86 = scmp.ne.s32.totalorder %s75, %s76
      %p87 = scmp.eq.s32.totalorder %s25, 0
      %p88 = por %p86, %p87
      %p89 = scmp.ne.s32.totalorder %s75, %s76
      %p90 = scmp.eq.s32.totalorder %s26, 1
      %p91 = por %p89, %p90
      %p93 = scmp.ne.s32.totalorder %s76, %s92
      %p94 = scmp.eq.s32.totalorder %s26, 0
      %p95 = por %p93, %p94
      %s96 = sadd.s32 %s27, %s28
      %s97 = sadd.s32 %s39, %s35
      %s98 = ssub.s32 %s96, %s97
      %p99 = scmp.eq.s32.totalorder %s98, 0
      %s101 = sadd.s32 %s100, 1
      %s102 = scalar_select %p99, %s100, %s101
      %p105 = pneg %p99
      %p106 = scmp.eq.s32.totalorder %s20, 1
      %p107 = por %p105, %p106
      %p108 = scmp.ne.s32.totalorder %s100, %s103
      %p109 = scmp.eq.s32.totalorder %s20, 0
      %p110 = por %p108, %p109
      %p111 = scmp.ne.s32.totalorder %s100, %s103
      %p112 = scmp.eq.s32.totalorder %s25, 1
      %p113 = por %p111, %p112
      %p114 = scmp.ne.s32.totalorder %s103, %s104
      %p115 = scmp.eq.s32.totalorder %s25, 0
      %p116 = por %p114, %p115
      %p117 = scmp.ne.s32.totalorder %s103, %s104
      %p118 = scmp.eq.s32.totalorder %s26, 1
      %p119 = por %p117, %p118
      %p121 = scmp.ne.s32.totalorder %s104, %s120
      %p122 = scmp.eq.s32.totalorder %s26, 0
      %p123 = por %p121, %p122
      %s125 = sadd.s32 %s124, 1
      %p128 = scmp.eq.s32.totalorder %s20, 1
      %p129 = scmp.ne.s32.totalorder %s124, %s126
      %p130 = scmp.eq.s32.totalorder %s20, 0
      %p131 = por %p129, %p130
      %p132 = scmp.ne.s32.totalorder %s124, %s126
      %p133 = scmp.eq.s32.totalorder %s25, 1
      %p134 = por %p132, %p133
      %p135 = scmp.ne.s32.totalorder %s126, %s127
      %p136 = scmp.eq.s32.totalorder %s25, 0
      %p137 = por %p135, %p136
      %p138 = scmp.ne.s32.totalorder %s126, %s127
      %p139 = scmp.eq.s32.totalorder %s26, 1
      %p140 = por %p138, %p139
      %p142 = scmp.ne.s32.totalorder %s127, %s141
      %p143 = scmp.eq.s32.totalorder %s26, 0
      %p144 = por %p142, %p143
      %s145 = ssub.s32 %s27, %s39
      %p146 = scmp.eq.s32.totalorder %s145, 0
      %s148 = sadd.s32 %s147, 1
      %s149 = scalar_select %p146, %s147, %s148
      %p152 = pneg %p146
      %p153 = scmp.eq.s32.totalorder %s20, 1
      %p154 = por %p152, %p153
      %p155 = scmp.ne.s32.totalorder %s147, %s150
      %p156 = scmp.eq.s32.totalorder %s20, 0
      %p157 = por %p155, %p156
      %p158 = scmp.ne.s32.totalorder %s147, %s150
      %p159 = scmp.eq.s32.totalorder %s25, 1
      %p160 = por %p158, %p159
      %p161 = scmp.ne.s32.totalorder %s150, %s151
      %p162 = scmp.eq.s32.totalorder %s25, 0
      %p163 = por %p161, %p162
      %p164 = scmp.ne.s32.totalorder %s150, %s151
      %p165 = scmp.eq.s32.totalorder %s26, 1
      %p166 = por %p164, %p165
      %p168 = scmp.ne.s32.totalorder %s151, %s167
      %p169 = scmp.eq.s32.totalorder %s26, 0
      %p170 = por %p168, %p169
      %p171 = scmp.le.s32.totalorder 1, %s20
      %p172 = scmp.lt.s32.totalorder %s20, 3
      %p173 = pnand %p171, %p172
      %p174 = pneg %p173
      // Predicated region
      $region9: #{tpu_custom_call.1} parent=5 // pred_check
        _
      $region10: #{tpu_custom_call.1} parent=5 // pred_check_branch
        %176 = sbr.rel (%p173) target = $region12
      $region11: #{tpu_custom_call.1} parent=5 // pred_region
        %s177 = ssub.s32 %s20, 1
        // Predicated region
        $region13: #{tpu_custom_call.1} parent=11 // pred_check
          %p178 = pneg %p137
        $region14: #{tpu_custom_call.1} parent=11 // pred_check_branch
          %180 = sbr.rel (%p178) target = $region16
        $region15: #{tpu_custom_call.1} parent=11 // pred_region
          _
        $region16: #{tpu_custom_call.1} parent=11 // pred_fallthru
          _
      $region12: #{tpu_custom_call.1} parent=5 // pred_fallthru
        _
      %p181 = scmp.lt.s32.totalorder %s20, 2
      // Predicated region
      $region17: #{tpu_custom_call.1} parent=5 // pred_check
        %p182 = pneg %p181
      $region18: #{tpu_custom_call.1} parent=5 // pred_check_branch
        %184 = sbr.rel (%p182) target = $region20
      $region19: #{tpu_custom_call.1} parent=5 // pred_region
        // Predicated region
        $region21: #{tpu_custom_call.1} parent=19 // pred_check
          %p185 = pneg %p54
        $region22: #{tpu_custom_call.1} parent=19 // pred_check_branch
          %187 = sbr.rel (%p185) target = $region24
        $region23: #{tpu_custom_call.1} parent=19 // pred_region
          %s188 = sand.u32 %s44, 1
          %s189 = scalar_lea.sflag [#allocation10], %s188
          %s190 = sand.u32 %s44, 1
          %s191 = smul.addr %s190, 8
          %s192 = scalar_lea.vmem [#allocation9], %s191
          %s193 = sadd.s32 %s27, %s28
          %s195 = ssub.s32 128, 128
          %196 = vsyncadd %s189, %s195
          %s197 = smul.addr %s193, 128
          %s198 = scalar_lea.hbm %s0, %s197
          %s200 = sshll.u32 %s192, 4
          %s201 = int_to_ptr.vmem [resolvable:$true] %s200
          %203 = dma.hbm_to_vmem [thread:$0]  %s198, 128, %s201, %s189
        $region24: #{tpu_custom_call.1} parent=19 // pred_fallthru
          _
        // Predicated region
        $region25: #{tpu_custom_call.1} parent=19 // pred_check
          %p204 = pneg %p82
        $region26: #{tpu_custom_call.1} parent=19 // pred_check_branch
          %206 = sbr.rel (%p204) target = $region28
        $region27: #{tpu_custom_call.1} parent=19 // pred_region
          %s207 = sand.u32 %s20, 1
          %s208 = scalar_lea.sflag [#allocation13], %s207
          %s209 = sand.u32 %s72, 1
          %s210 = smul.addr %s209, 32
          %s211 = scalar_lea.vmem [#allocation12], %s210
          %s212 = sadd.s32 %s27, %s28
          %s214 = ssub.s32 512, 512
          %215 = vsyncadd %s208, %s214
          %s216 = smul.addr %s212, 128
          %s217 = scalar_lea.hbm %s1, %s216
          %s218 = sshll.u32 %s211, 4
          %s219 = int_to_ptr.vmem [resolvable:$true] %s218
          %224 = dma.hbm_to_vmem [thread:$0]  %s217, 512, %s219, %s208, 256, 128, 8
        $region28: #{tpu_custom_call.1} parent=19 // pred_fallthru
          _
        // Predicated region
        $region29: #{tpu_custom_call.1} parent=19 // pred_check
          %p225 = pneg %p110
        $region30: #{tpu_custom_call.1} parent=19 // pred_check_branch
          %227 = sbr.rel (%p225) target = $region32
        $region31: #{tpu_custom_call.1} parent=19 // pred_region
          %s228 = sand.u32 %s20, 1
          %s229 = scalar_lea.sflag [#allocation13], %s228
          %s230 = sand.u32 %s100, 1
          %s231 = smul.addr %s230, 32
          %s232 = scalar_lea.vmem [#allocation14], %s231
          %s233 = sadd.s32 %s27, %s28
          %s235 = ssub.s32 512, 512
          %236 = vsyncadd %s229, %s235
          %s237 = smul.addr %s233, 128
          %s238 = scalar_lea.hbm %s2, %s237
          %s239 = sshll.u32 %s232, 4
          %s240 = int_to_ptr.vmem [resolvable:$true] %s239
          %245 = dma.hbm_to_vmem [thread:$0]  %s238, 512, %s240, %s229, 256, 128, 8
        $region32: #{tpu_custom_call.1} parent=19 // pred_fallthru
          _
      $region20: #{tpu_custom_call.1} parent=5 // pred_fallthru
        _
      %p246 = scmp.le.s32.totalorder 1, %s20
      %p247 = scmp.lt.s32.totalorder %s20, 3
      %p248 = pnand %p246, %p247
      %p249 = pneg %p248
      // Predicated region
      $region33: #{tpu_custom_call.1} parent=5 // pred_check
        _
      $region34: #{tpu_custom_call.1} parent=5 // pred_check_branch
        %251 = sbr.rel (%p248) target = $region36
      $region35: #{tpu_custom_call.1} parent=5 // pred_region
        %s252 = ssub.s32 %s20, 1
        %s253 = sand.u32 %s47, 1
        %s254 = scalar_lea.sflag [#allocation10], %s253
        %s255 = sand.u32 %s47, 1
        %s256 = smul.addr %s255, 8
        %s257 = scalar_lea.vmem [#allocation9], %s256
        // Predicated region
        $region37: #{tpu_custom_call.1} parent=35 // pred_check
          %p258 = pneg %p60
        $region38: #{tpu_custom_call.1} parent=35 // pred_check_branch
          %260 = sbr.rel (%p258) target = $region40
        $region39: #{tpu_custom_call.1} parent=35 // pred_region
          %261 = dma.done %s254, 128
        $region40: #{tpu_custom_call.1} parent=35 // pred_fallthru
          _
        %s262 = sand.u32 %s25, 1
        %s263 = scalar_lea.sflag [#allocation13], %s262
        %s264 = sand.u32 %s75, 1
        %s265 = smul.addr %s264, 32
        %s266 = scalar_lea.vmem [#allocation12], %s265
        // Predicated region
        $region41: #{tpu_custom_call.1} parent=35 // pred_check
          %p267 = pneg %p88
        $region42: #{tpu_custom_call.1} parent=35 // pred_check_branch
          %269 = sbr.rel (%p267) target = $region44
        $region43: #{tpu_custom_call.1} parent=35 // pred_region
          %270 = dma.done %s263, 512
        $region44: #{tpu_custom_call.1} parent=35 // pred_fallthru
          _
        %s271 = sand.u32 %s25, 1
        %s272 = scalar_lea.sflag [#allocation13], %s271
        %s273 = sand.u32 %s103, 1
        %s274 = smul.addr %s273, 32
        %s275 = scalar_lea.vmem [#allocation14], %s274
        // Predicated region
        $region45: #{tpu_custom_call.1} parent=35 // pred_check
          %p276 = pneg %p116
        $region46: #{tpu_custom_call.1} parent=35 // pred_check_branch
          %278 = sbr.rel (%p276) target = $region48
        $region47: #{tpu_custom_call.1} parent=35 // pred_region
          %279 = dma.done %s272, 512
        $region48: #{tpu_custom_call.1} parent=35 // pred_fallthru
          _
        %s280 = sand.u32 %s47, 1
        %s281 = scalar_lea.sflag [#allocation10], %s280
        %s282 = sand.u32 %s47, 1
        %s283 = smul.addr %s282, 8
        %s284 = scalar_lea.vmem [#allocation9], %s283
        %p285 = pneg %p60
        %p286 = pneg %p57
        %s287 = sand.u32 %s25, 1
        %s288 = scalar_lea.sflag [#allocation13], %s287
        %s289 = sand.u32 %s75, 1
        %s290 = smul.addr %s289, 32
        %s291 = scalar_lea.vmem [#allocation12], %s290
        %p292 = pneg %p88
        %p293 = pneg %p85
        %s294 = sand.u32 %s25, 1
        %s295 = scalar_lea.sflag [#allocation13], %s294
        %s296 = sand.u32 %s103, 1
        %s297 = smul.addr %s296, 32
        %s298 = scalar_lea.vmem [#allocation14], %s297
        %p299 = pneg %p116
        %p300 = pneg %p113
        %p301 = pneg %p137
        %p302 = pneg %p134
        %p303 = pneg %p163
        %p304 = pneg %p160
        %s305 = sand.u32 %s150, 1
        %s306 = scalar_lea.sflag [#allocation11], %s305
        %s307 = sand.u32 %s150, 1
        %s308 = smul.addr %s307, 8
        %s309 = scalar_lea.vmem [#allocation15], %s308
        %s310 = sadd.s32 %s29, %s30
        %s311 = sadd.s32 %s29, %s30
        %s312 = sadd.s32 %s29, %s30
        %p313 = scmp.eq.s32.totalorder %s30, 0
        // Predicated region
        $region49: #{tpu_custom_call.1} parent=35 // pred_check
          %p314 = pneg %p313
        $region50: #{tpu_custom_call.1} parent=35 // pred_check_branch
          %316 = sbr.rel (%p314) target = $region52
        $region51: #{tpu_custom_call.1} parent=35 // pred_region
          %317 = vst [vmem:[#allocation2] sm:$0xff] 0.0
          %318 = vst [vmem:[#allocation3] sm:$0xff] 0.0
          %319 = vst [vmem:[#allocation4] sm:$0xff] 0.0
          %320 = vst [vmem:[#allocation5] sm:$0xff] 0.0
          %321 = vst [vmem:[#allocation6] sm:$0xff] 0.0
          %322 = vst [vmem:[#allocation7] sm:$0xff] 0.0
        $region52: #{tpu_custom_call.1} parent=35 // pred_fallthru
          _
        %s323 = sld [smem:[#allocation8]]
        %v324 = vld [vmem:[%s257] sm:$0xff]
        %v325 = vld [vmem:[%s266] sm:$0xff]
        %v326 = vld [vmem:[%s266 + $0x8] sm:$0xff]
        %v327 = vld [vmem:[%s266 + $0x10] sm:$0xff]
        %v328 = vld [vmem:[%s266 + $0x18] sm:$0xff]
        %v329 = vld [vmem:[%s275] sm:$0xff]
        %v330 = vld [vmem:[%s275 + $0x8] sm:$0xff]
        %v331 = vld [vmem:[%s275 + $0x10] sm:$0xff]
        %v332 = vld [vmem:[%s275 + $0x18] sm:$0xff]
        %v333 = vsub.f32 %v325, %v329
        %v334 = vsub.f32 %v326, %v330
        %v335 = vsub.f32 %v327, %v331
        %v336 = vsub.f32 %v328, %v332
        %v337 = vand.u32 2147483647, %v333
        %v338 = vand.u32 2147483647, %v334
        %v339 = vand.u32 2147483647, %v335
        %v340 = vand.u32 2147483647, %v336
        %v341 = vmax.f32 %v337, %v338
        %v342 = vmax.f32 %v339, %v340
        %v343 = vmax.f32 %v341, %v342
        %v344 = vadd.f32 %v337, %v338
        %v345 = vadd.f32 %v344, %v339
        %v346 = vadd.f32 %v345, %v340
        %v347 = vmul.f32 %v346, 0.25
        %v348 = vstv %s323
        %v349 = vmul.f32 %v324, %v348
        %vm350 = vcmp.le.f32.partialorder %v343, %v349
        %v351 = vsel %vm350, 1, 0
        %v352 = vcvt.s32.f32 %v351
        %v353 = vld [vmem:[#allocation2] sm:$0xff]
        %v354 = vadd.f32 %v353, %v352
        %355 = vst [vmem:[#allocation2] sm:$0xff] %v354
        %v356 = vld [vmem:[#allocation3] sm:$0xff]
        %v357 = vadd.f32 %v356, %v324
        %358 = vst [vmem:[#allocation3] sm:$0xff] %v357
        %v359 = vld [vmem:[#allocation4] sm:$0xff]
        %v360 = vadd.f32 %v359, %v347
        %361 = vst [vmem:[#allocation4] sm:$0xff] %v360
        %v362 = vld [vmem:[#allocation5] sm:$0xff]
        %v363 = vmul.f32 %v324, %v347
        %v364 = vadd.f32 %v362, %v363
        %365 = vst [vmem:[#allocation5] sm:$0xff] %v364
        %v366 = vld [vmem:[#allocation6] sm:$0xff]
        %v367 = vmul.f32 %v324, %v324
        %v368 = vadd.f32 %v366, %v367
        %369 = vst [vmem:[#allocation6] sm:$0xff] %v368
        %v370 = vld [vmem:[#allocation7] sm:$0xff]
        %v371 = vmul.f32 %v347, %v347
        %v372 = vadd.f32 %v370, %v371
        %373 = vst [vmem:[#allocation7] sm:$0xff] %v372
        // Predicated region
        $region53: #{tpu_custom_call.1} parent=35 // pred_check
          %p374 = pneg %p313
        $region54: #{tpu_custom_call.1} parent=35 // pred_check_branch
          %376 = sbr.rel (%p374) target = $region56
        $region55: #{tpu_custom_call.1} parent=35 // pred_region
          %377 = vst [vmem:[%s309] sm:$0xff] 0.0
          %v378 = vld [vmem:[#allocation2] sm:$0xff]
          %379 = vadd.xlane.f32.xlu0 %v378
          %v380 = vpop.xlane.xlu0 %379
          %v381 = vrot.slane %v380, 4
          %v382 = vadd.f32 %v380, %v381
          %v383 = vrot.slane %v382, 2
          %v384 = vadd.f32 %v382, %v383
          %v385 = vrot.slane %v384, 1
          %v386 = vadd.f32 %v384, %v385
          %s387 = vtos %v386
          %v388 = vstv %s387
          %389 = vst [vmem:[%s309] sm:$0x1] %v388
          %v390 = vld [vmem:[#allocation3] sm:$0xff]
          %391 = vadd.xlane.f32.xlu0 %v390
          %v392 = vpop.xlane.xlu0 %391
          %v393 = vrot.slane %v392, 4
          %v394 = vadd.f32 %v392, %v393
          %v395 = vrot.slane %v394, 2
          %v396 = vadd.f32 %v394, %v395
          %v397 = vrot.slane %v396, 1
          %v398 = vadd.f32 %v396, %v397
          %s399 = vtos %v398
          %v400 = vstv %s399
          %401 = vst [vmem:[%s309 + $0x1] sm:$0x1] %v400
          %v402 = vld [vmem:[#allocation4] sm:$0xff]
          %403 = vadd.xlane.f32.xlu0 %v402
          %v404 = vpop.xlane.xlu0 %403
          %v405 = vrot.slane %v404, 4
          %v406 = vadd.f32 %v404, %v405
          %v407 = vrot.slane %v406, 2
          %v408 = vadd.f32 %v406, %v407
          %v409 = vrot.slane %v408, 1
          %v410 = vadd.f32 %v408, %v409
          %s411 = vtos %v410
          %v412 = vstv %s411
          %413 = vst [vmem:[%s309 + $0x2] sm:$0x1] %v412
          %v414 = vld [vmem:[#allocation5] sm:$0xff]
          %415 = vadd.xlane.f32.xlu0 %v414
          %v416 = vpop.xlane.xlu0 %415
          %v417 = vrot.slane %v416, 4
          %v418 = vadd.f32 %v416, %v417
          %v419 = vrot.slane %v418, 2
          %v420 = vadd.f32 %v418, %v419
          %v421 = vrot.slane %v420, 1
          %v422 = vadd.f32 %v420, %v421
          %s423 = vtos %v422
          %v424 = vstv %s423
          %425 = vst [vmem:[%s309 + $0x3] sm:$0x1] %v424
          %v426 = vld [vmem:[#allocation6] sm:$0xff]
          %427 = vadd.xlane.f32.xlu0 %v426
          %v428 = vpop.xlane.xlu0 %427
          %v429 = vrot.slane %v428, 4
          %v430 = vadd.f32 %v428, %v429
          %v431 = vrot.slane %v430, 2
          %v432 = vadd.f32 %v430, %v431
          %v433 = vrot.slane %v432, 1
          %v434 = vadd.f32 %v432, %v433
          %s435 = vtos %v434
          %v436 = vstv %s435
          %437 = vst [vmem:[%s309 + $0x4] sm:$0x1] %v436
          %v438 = vld [vmem:[#allocation7] sm:$0xff]
          %439 = vadd.xlane.f32.xlu0 %v438
          %v440 = vpop.xlane.xlu0 %439
          %v441 = vrot.slane %v440, 4
          %v442 = vadd.f32 %v440, %v441
          %v443 = vrot.slane %v442, 2
          %v444 = vadd.f32 %v442, %v443
          %v445 = vrot.slane %v444, 1
          %v446 = vadd.f32 %v444, %v445
          %s447 = vtos %v446
          %v448 = vstv %s447
          %449 = vst [vmem:[%s309 + $0x5] sm:$0x1] %v448
        $region56: #{tpu_custom_call.1} parent=35 // pred_fallthru
          _
        %s450 = sand.u32 %s150, 1
        %s451 = scalar_lea.sflag [#allocation11], %s450
        %s452 = sand.u32 %s150, 1
        %s453 = smul.addr %s452, 8
        %s454 = scalar_lea.vmem [#allocation15], %s453
        // Predicated region
        $region57: #{tpu_custom_call.1} parent=35 // pred_check
          %p455 = pneg %p160
        $region58: #{tpu_custom_call.1} parent=35 // pred_check_branch
          %457 = sbr.rel (%p455) target = $region60
        $region59: #{tpu_custom_call.1} parent=35 // pred_region
          %s459 = ssub.s32 128, 128
          %460 = vsyncadd %s451, %s459
          %s461 = smul.addr %s29, 128
          %s462 = scalar_lea.hbm %s4, %s461
          %s464 = sshll.u32 %s454, 4
          %s465 = int_to_ptr.vmem [resolvable:$true] %s464
          %467 = dma.vmem_to_hbm [thread:$0]  %s465, 128, %s462, %s451
        $region60: #{tpu_custom_call.1} parent=35 // pred_fallthru
          _
      $region36: #{tpu_custom_call.1} parent=5 // pred_fallthru
        _
      %p468 = scmp.le.s32.totalorder 2, %s20
      // Predicated region
      $region61: #{tpu_custom_call.1} parent=5 // pred_check
        %p469 = pneg %p468
      $region62: #{tpu_custom_call.1} parent=5 // pred_check_branch
        %471 = sbr.rel (%p469) target = $region64
      $region63: #{tpu_custom_call.1} parent=5 // pred_region
        %s472 = ssub.s32 %s20, 2
        // Predicated region
        $region65: #{tpu_custom_call.1} parent=63 // pred_check
          %p473 = pneg %p166
        $region66: #{tpu_custom_call.1} parent=63 // pred_check_branch
          %475 = sbr.rel (%p473) target = $region68
        $region67: #{tpu_custom_call.1} parent=63 // pred_region
          %s476 = sand.u32 %s151, 1
          %s477 = scalar_lea.sflag [#allocation11], %s476
          %s478 = sand.u32 %s151, 1
          %s479 = smul.addr %s478, 8
          %s480 = scalar_lea.vmem [#allocation15], %s479
          %481 = dma.done %s477, 128
        $region68: #{tpu_custom_call.1} parent=63 // pred_fallthru
          _
      $region64: #{tpu_custom_call.1} parent=5 // pred_fallthru
        _
    $region6: #{tpu_custom_call.1} parent=1 // loop_footer
      %s24 = sadd.s32 1, %s20
    $region7: #{tpu_custom_call.1} parent=1 // loop_footer_branch
      %19 = sbr.rel target = $region3
    $region8: #{tpu_custom_call.1} parent=1 // loop_exit
      _
    %482 = vsyncpa [#allocation10], 1
    %s483 = scalar_lea.sflag [#allocation10], 1
    %484 = vsyncpa %s483, 1
    %485 = vsyncpa [#allocation13], 1
    %s486 = scalar_lea.sflag [#allocation13], 1
    %487 = vsyncpa %s486, 1
    %488 = vsyncpa [#allocation11], 1
    %s489 = scalar_lea.sflag [#allocation11], 1
    %490 = vsyncpa %s489, 1

</llo_original>
